<compile_context>
chip_gen: v5e
topology: v5e:2x2
jax: 0.10.0
libtpu: 0.0.40
codegen_flags: <defaults>
</compile_context>

<pallas_src>
import functools

import jax
import jax.numpy as jnp
from jax.experimental import pallas as pl
from jax.experimental.pallas import tpu as pltpu

LANES = 128
SUBLANES = 8
MAX_ROWS_PER_TILE = 4096      # 4096 x 128 f32 = 2 MiB per input block
MAX_SUB_ROWS = 512            # inner-chunk rows for the per-tile reduction
VMEM_LIMIT_BYTES = 32 * 1024 * 1024   # > 2 inputs x 2 buffers x 2 MiB + slack


def _mix_partial_kernel(t_ref, p_ref, mse_ref, l1_ref, *,
                        rows_per_tile, sub_rows, m_valid):
    """Fold this tile into resident (8,128) partial sums of (t-p)^2 and |t-p|."""
    i = pl.program_id(0)

    # Zero the resident accumulator blocks on the first grid step.
    @pl.when(i == 0)
    def _():
        mse_ref[...] = jnp.zeros_like(mse_ref)
        l1_ref[...] = jnp.zeros_like(l1_ref)

    row_start = i * rows_per_tile
    n_sub = rows_per_tile // sub_rows
    groups = sub_rows // SUBLANES

    def accumulate(masked):
        def step(j, carry):
            sq_acc, ab_acc = carry
            off = pl.multiple_of(j * sub_rows, sub_rows)
            t = t_ref[pl.ds(off, sub_rows), :].astype(jnp.float32)
            p = p_ref[pl.ds(off, sub_rows), :].astype(jnp.float32)
            diff = t - p
            if masked:
                # Ragged last tile: rows >= m_valid hold garbage from the
                # clipped DMA; zero them before squaring / abs.
                row_ids = jax.lax.broadcasted_iota(
                    jnp.int32, (sub_rows, LANES), 0)
                valid = (row_start + off + row_ids) < m_valid
                diff = jnp.where(valid, diff, 0.0)
            # VPU-only partial reduction: collapse rows onto (8, 128) with
            # plain vreg adds (no XLU in the hot loop).
            sq = (diff * diff).reshape(groups, SUBLANES, LANES).sum(axis=0)
            ab = jnp.abs(diff).reshape(groups, SUBLANES, LANES).sum(axis=0)
            return sq_acc + sq, ab_acc + ab

        zeros = jnp.zeros((SUBLANES, LANES), jnp.float32)
        sq_tot, ab_tot = jax.lax.fori_loop(
            0, n_sub, step, (zeros, zeros), unroll=True)
        mse_ref[...] = mse_ref[...] + sq_tot
        l1_ref[...] = l1_ref[...] + ab_tot

    tile_is_full = (row_start + rows_per_tile) <= m_valid

    @pl.when(tile_is_full)
    def _():
        accumulate(masked=False)

    @pl.when(jnp.logical_not(tile_is_full))
    def _():
        accumulate(masked=True)


def mix_loss(target, predict, coefficients=None):
    """Pallas implementation of Mix.forward with losses = {mse, l1}.

    Returns (loss, {"mse": mse, "l1": l1}) as float32 scalars.
    """
    if coefficients is None:
        coefficients = {"mse": 1.0, "l1": 1.0}
    c_mse = float(coefficients["mse"])
    c_l1 = float(coefficients["l1"])
    n_losses = 2

    assert target.shape == predict.shape
    n_elems = int(target.size)
    assert n_elems > 0

    # Flatten to a lane-dense (m, 128) slab.  When n_elems is a multiple of
    # 8*128 (the common case) this is a free reshape — no pad copy.
    chunk = SUBLANES * LANES
    t_flat = target.reshape(-1)
    p_flat = predict.reshape(-1)
    rem = n_elems % chunk
    if rem:
        # TODO(synk): for unaligned sizes this pad is a full read+write copy
        # of both inputs; replace with element-granular masking of the last
        # (1D-blocked) tile to keep the op purely streaming.
        t_flat = jnp.pad(t_flat, (0, chunk - rem))
        p_flat = jnp.pad(p_flat, (0, chunk - rem))
    m = int(t_flat.size) // LANES          # multiple of 8; padded rows are 0

    rows_per_tile = min(MAX_ROWS_PER_TILE, m)
    sub_rows = rows_per_tile
    for cand in (MAX_SUB_ROWS, 256, 128, 64, 32, 16, SUBLANES):
        if rows_per_tile % cand == 0:
            sub_rows = cand
            break
    grid = (pl.cdiv(m, rows_per_tile),)

    t2d = t_flat.reshape(m, LANES)
    p2d = p_flat.reshape(m, LANES)

    in_spec = pl.BlockSpec((rows_per_tile, LANES), lambda i: (i, 0))
    out_spec = pl.BlockSpec((SUBLANES, LANES), lambda i: (0, 0))
    part_shape = jax.ShapeDtypeStruct((SUBLANES, LANES), jnp.float32)

    kernel = functools.partial(
        _mix_partial_kernel,
        rows_per_tile=rows_per_tile,
        sub_rows=sub_rows,
        m_valid=m,  # padded rows are exact zeros, so counting them is harmless
    )

    in_bytes = m * LANES * (t2d.dtype.itemsize + p2d.dtype.itemsize)
    mse_part, l1_part = pl.pallas_call(
        kernel,
        out_shape=(part_shape, part_shape),
        grid_spec=pltpu.PrefetchScalarGridSpec(
            num_scalar_prefetch=0,
            grid=grid,
            in_specs=[in_spec, in_spec],
            out_specs=[out_spec, out_spec],
        ),
        compiler_params=pltpu.CompilerParams(
            dimension_semantics=("arbitrary",),
            vmem_limit_bytes=VMEM_LIMIT_BYTES),
        cost_estimate=pl.CostEstimate(
            flops=5 * m * LANES,
            bytes_accessed=in_bytes,
            transcendentals=0),
    )(t2d, p2d)

    # Tiny finalize in plain JAX: cross-lane reduce, means, coefficient mix.
    inv_n = 1.0 / float(n_elems)
    mse = jnp.sum(mse_part) * inv_n
    l1 = jnp.sum(l1_part) * inv_n
    loss = (c_mse * mse + c_l1 * l1) / float(n_losses)
    return loss, {"mse": mse, "l1": l1}


if __name__ == "__main__":
    key = jax.random.PRNGKey(0)
    k1, k2 = jax.random.split(key)

    # NCHW, as the PyTorch module would receive from an image pipeline.
    target = jax.random.normal(k1, (2, 4, 16, 16), dtype=jnp.float32)
    predict = jax.random.normal(k2, (2, 4, 16, 16), dtype=jnp.float32)

    loss, parts = mix_loss(target, predict)
    loss = jax.block_until_ready(loss)
    parts = jax.block_until_ready(parts)

    # Reference check against plain-JAX Mix semantics.
    diff = target - predict
    mse_ref = jnp.mean(diff * diff)
    l1_ref = jnp.mean(jnp.abs(diff))
    loss_ref = (1.0 * mse_ref + 1.0 * l1_ref) / 2.0

    assert jnp.allclose(parts["mse"], mse_ref, rtol=1e-5, atol=1e-5)
    assert jnp.allclose(parts["l1"], l1_ref, rtol=1e-5, atol=1e-5)
    assert jnp.allclose(loss, loss_ref, rtol=1e-5, atol=1e-5)

    print("KERNEL_OK")
</pallas_src>

<mosaic_0001>
module attributes {stable_mosaic.version = 11 : i64} {
  func.func @_mix_partial_kernel(%arg0: i32, %arg1: memref<16x128xf32, #tpu.memory_space<vmem>>, %arg2: memref<16x128xf32, #tpu.memory_space<vmem>>, %arg3: memref<8x128xf32, #tpu.memory_space<vmem>>, %arg4: memref<8x128xf32, #tpu.memory_space<vmem>>) attributes {dimension_semantics = [#tpu.dimension_semantics<arbitrary>], iteration_bounds = array<i64: 1>, scalar_prefetch = 0 : i64, scratch_operands = 0 : i64, tpu.core_type = #tpu.core_type<tc>, window_params = [{transform_indices = @transform_0, window_bounds = array<i64: 16, 128>}, {transform_indices = @transform_1, window_bounds = array<i64: 16, 128>}, {pipeline_mode = #tpu.pipeline_mode<synchronous>, transform_indices = @transform_2, window_bounds = array<i64: 8, 128>}, {pipeline_mode = #tpu.pipeline_mode<synchronous>, transform_indices = @transform_3, window_bounds = array<i64: 8, 128>}]} {
    %c0_i32 = arith.constant 0 : i32
    %0 = arith.cmpi eq, %arg0, %c0_i32 : i32
    %1 = arith.extui %0 : i1 to i32
    %c0_i32_0 = arith.constant 0 : i32
    %2 = arith.cmpi ne, %1, %c0_i32_0 : i32
    scf.if %2 {
      %cst = arith.constant 0.000000e+00 : f32
      %11 = vector.broadcast %cst : f32 to vector<8x128xf32>
      %c0 = arith.constant 0 : index
      %c0_5 = arith.constant 0 : index
      %12 = vector.load %arg3[%c0, %c0_5] : memref<8x128xf32, #tpu.memory_space<vmem>>, vector<8x128xf32>
      tpu.vector_store %arg3[%c0, %c0_5], %11 {strides = array<i32>} : memref<8x128xf32, #tpu.memory_space<vmem>>, vector<8x128xf32>,
      %cst_6 = arith.constant 0.000000e+00 : f32
      %13 = vector.broadcast %cst_6 : f32 to vector<8x128xf32>
      %c0_7 = arith.constant 0 : index
      %c0_8 = arith.constant 0 : index
      %14 = vector.load %arg4[%c0_7, %c0_8] : memref<8x128xf32, #tpu.memory_space<vmem>>, vector<8x128xf32>
      tpu.vector_store %arg4[%c0_7, %c0_8], %13 {strides = array<i32>} : memref<8x128xf32, #tpu.memory_space<vmem>>, vector<8x128xf32>,
    } else {
    }
    %c16_i32 = arith.constant 16 : i32
    %3 = arith.muli %arg0, %c16_i32 : i32
    %c16_i32_1 = arith.constant 16 : i32
    %4 = arith.addi %3, %c16_i32_1 : i32
    %c16_i32_2 = arith.constant 16 : i32
    %5 = arith.cmpi sle, %4, %c16_i32_2 : i32
    %6 = arith.extui %5 : i1 to i32
    %c0_i32_3 = arith.constant 0 : i32
    %7 = arith.cmpi ne, %6, %c0_i32_3 : i32
    scf.if %7 {
      %cst = arith.constant 0.000000e+00 : f32
      %11 = vector.broadcast %cst : f32 to vector<8x128xf32>
      %c0_i32_5 = arith.constant 0 : i32
      %c16_i32_6 = arith.constant 16 : i32
      %12 = arith.muli %c0_i32_5, %c16_i32_6 : i32
      %13 = tpu.assume_multiple %12, 16 : i32
      %14 = arith.index_cast %13 : i32 to index
      %c0 = arith.constant 0 : index
      %15 = vector.load %arg1[%14, %c0] : memref<16x128xf32, #tpu.memory_space<vmem>>, vector<16x128xf32>
      %16 = arith.index_cast %13 : i32 to index
      %c0_7 = arith.constant 0 : index
      %17 = vector.load %arg2[%16, %c0_7] : memref<16x128xf32, #tpu.memory_space<vmem>>, vector<16x128xf32>
      %18 = arith.subf %15, %17 : vector<16x128xf32>
      %19 = arith.mulf %18, %18 : vector<16x128xf32>
      %20 = vector.shape_cast %19 : vector<16x128xf32> to vector<2x8x128xf32>
      %cst_8 = arith.constant dense<0.000000e+00> : vector<8x128xf32>
      %21 = vector.multi_reduction <add>, %20, %cst_8 [0] : vector<2x8x128xf32> to vector<8x128xf32>
      %22 = math.absf %18 : vector<16x128xf32>
      %23 = vector.shape_cast %22 : vector<16x128xf32> to vector<2x8x128xf32>
      %cst_9 = arith.constant dense<0.000000e+00> : vector<8x128xf32>
      %24 = vector.multi_reduction <add>, %23, %cst_9 [0] : vector<2x8x128xf32> to vector<8x128xf32>
      %25 = arith.addf %11, %21 : vector<8x128xf32>
      %26 = arith.addf %11, %24 : vector<8x128xf32>
      %c1_i32 = arith.constant 1 : i32
      %c0_10 = arith.constant 0 : index
      %c0_11 = arith.constant 0 : index
      %27 = vector.load %arg3[%c0_10, %c0_11] : memref<8x128xf32, #tpu.memory_space<vmem>>, vector<8x128xf32>
      %28 = arith.addf %27, %25 : vector<8x128xf32>
      %c0_12 = arith.constant 0 : index
      %c0_13 = arith.constant 0 : index
      %29 = vector.load %arg3[%c0_12, %c0_13] : memref<8x128xf32, #tpu.memory_space<vmem>>, vector<8x128xf32>
      tpu.vector_store %arg3[%c0_12, %c0_13], %28 {strides = array<i32>} : memref<8x128xf32, #tpu.memory_space<vmem>>, vector<8x128xf32>,
      %c0_14 = arith.constant 0 : index
      %c0_15 = arith.constant 0 : index
      %30 = vector.load %arg4[%c0_14, %c0_15] : memref<8x128xf32, #tpu.memory_space<vmem>>, vector<8x128xf32>
      %31 = arith.addf %30, %26 : vector<8x128xf32>
      %c0_16 = arith.constant 0 : index
      %c0_17 = arith.constant 0 : index
      %32 = vector.load %arg4[%c0_16, %c0_17] : memref<8x128xf32, #tpu.memory_space<vmem>>, vector<8x128xf32>
      tpu.vector_store %arg4[%c0_16, %c0_17], %31 {strides = array<i32>} : memref<8x128xf32, #tpu.memory_space<vmem>>, vector<8x128xf32>,
    } else {
    }
    %true = arith.constant true
    %8 = arith.xori %5, %true : i1
    %9 = arith.extui %8 : i1 to i32
    %c0_i32_4 = arith.constant 0 : i32
    %10 = arith.cmpi ne, %9, %c0_i32_4 : i32
    scf.if %10 {
      %cst = arith.constant 0.000000e+00 : f32
      %11 = vector.broadcast %cst : f32 to vector<8x128xf32>
      %c0_i32_5 = arith.constant 0 : i32
      %c16_i32_6 = arith.constant 16 : i32
      %12 = arith.muli %c0_i32_5, %c16_i32_6 : i32
      %13 = tpu.assume_multiple %12, 16 : i32
      %14 = arith.index_cast %13 : i32 to index
      %c0 = arith.constant 0 : index
      %15 = vector.load %arg1[%14, %c0] : memref<16x128xf32, #tpu.memory_space<vmem>>, vector<16x128xf32>
      %16 = arith.index_cast %13 : i32 to index
      %c0_7 = arith.constant 0 : index
      %17 = vector.load %arg2[%16, %c0_7] : memref<16x128xf32, #tpu.memory_space<vmem>>, vector<16x128xf32>
      %18 = arith.subf %15, %17 : vector<16x128xf32>
      %19 = tpu.iota {dimensions = array<i32: 0>} : vector<16x128xi32>
      %20 = arith.addi %3, %13 : i32
      %21 = vector.broadcast %20 : i32 to vector<16x128xi32>
      %22 = arith.addi %21, %19 : vector<16x128xi32>
      %c16_i32_8 = arith.constant 16 : i32
      %23 = vector.broadcast %c16_i32_8 : i32 to vector<16x128xi32>
      %24 = arith.cmpi slt, %22, %23 : vector<16x128xi32>
      %cst_9 = arith.constant 0.000000e+00 : f32
      %25 = vector.broadcast %cst_9 : f32 to vector<16x128xf32>
      %26 = arith.select %24, %18, %25 : vector<16x128xi1>, vector<16x128xf32>
      %27 = arith.mulf %26, %26 : vector<16x128xf32>
      %28 = vector.shape_cast %27 : vector<16x128xf32> to vector<2x8x128xf32>
      %cst_10 = arith.constant dense<0.000000e+00> : vector<8x128xf32>
      %29 = vector.multi_reduction <add>, %28, %cst_10 [0] : vector<2x8x128xf32> to vector<8x128xf32>
      %30 = math.absf %26 : vector<16x128xf32>
      %31 = vector.shape_cast %30 : vector<16x128xf32> to vector<2x8x128xf32>
      %cst_11 = arith.constant dense<0.000000e+00> : vector<8x128xf32>
      %32 = vector.multi_reduction <add>, %31, %cst_11 [0] : vector<2x8x128xf32> to vector<8x128xf32>
      %33 = arith.addf %11, %29 : vector<8x128xf32>
      %34 = arith.addf %11, %32 : vector<8x128xf32>
      %c1_i32 = arith.constant 1 : i32
      %c0_12 = arith.constant 0 : index
      %c0_13 = arith.constant 0 : index
      %35 = vector.load %arg3[%c0_12, %c0_13] : memref<8x128xf32, #tpu.memory_space<vmem>>, vector<8x128xf32>
      %36 = arith.addf %35, %33 : vector<8x128xf32>
      %c0_14 = arith.constant 0 : index
      %c0_15 = arith.constant 0 : index
      %37 = vector.load %arg3[%c0_14, %c0_15] : memref<8x128xf32, #tpu.memory_space<vmem>>, vector<8x128xf32>
      tpu.vector_store %arg3[%c0_14, %c0_15], %36 {strides = array<i32>} : memref<8x128xf32, #tpu.memory_space<vmem>>, vector<8x128xf32>,
      %c0_16 = arith.constant 0 : index
      %c0_17 = arith.constant 0 : index
      %38 = vector.load %arg4[%c0_16, %c0_17] : memref<8x128xf32, #tpu.memory_space<vmem>>, vector<8x128xf32>
      %39 = arith.addf %38, %34 : vector<8x128xf32>
      %c0_18 = arith.constant 0 : index
      %c0_19 = arith.constant 0 : index
      %40 = vector.load %arg4[%c0_18, %c0_19] : memref<8x128xf32, #tpu.memory_space<vmem>>, vector<8x128xf32>
      tpu.vector_store %arg4[%c0_18, %c0_19], %39 {strides = array<i32>} : memref<8x128xf32, #tpu.memory_space<vmem>>, vector<8x128xf32>,
    } else {
    }
    return
  }
  func.func @transform_0(%arg0: i32) -> (i32, i32) {
    %c0_i32 = arith.constant 0 : i32
    %c0_i32_0 = arith.constant 0 : i32
    return %arg0, %c0_i32 : i32, i32
  }
  func.func @transform_1(%arg0: i32) -> (i32, i32) {
    %c0_i32 = arith.constant 0 : i32
    %c0_i32_0 = arith.constant 0 : i32
    return %arg0, %c0_i32 : i32, i32
  }
  func.func @transform_2(%arg0: i32) -> (i32, i32) {
    %c0_i32 = arith.constant 0 : i32
    %c0_i32_0 = arith.constant 0 : i32
    %c0_i32_1 = arith.constant 0 : i32
    return %c0_i32, %c0_i32_0 : i32, i32
  }
  func.func @transform_3(%arg0: i32) -> (i32, i32) {
    %c0_i32 = arith.constant 0 : i32
    %c0_i32_0 = arith.constant 0 : i32
    %c0_i32_1 = arith.constant 0 : i32
    return %c0_i32, %c0_i32_0 : i32, i32
  }
}

</mosaic_0001>

<llo_original>
// kernel: tpu_custom_call.1
$region0: #{tpu_custom_call.1}
  #allocation0 [shape = 'u32[]', space=smem, size = 0x4, offset = 0x4, fixed_abs, tag = 'smem constant byte address 0x4 - core index']
  #allocation1 [shape = 'u32[72,128]{1,0:T(1,128)}', space=vmem, size = 0x9000, scoped, tag = 'internal scratch']
  %s0 = inlined_call_operand.hbm [shape: f32[16,128], index: 0, kind: input, shape index: {}]
  %s1 = inlined_call_operand.hbm [shape: f32[16,128], index: 1, kind: input, shape index: {}]
  %s2 = inlined_call_operand.hbm [shape: f32[8,128], index: 2, kind: output, shape index: {0}]
  %s3 = inlined_call_operand.hbm [shape: f32[8,128], index: 3, kind: output, shape index: {1}]
  %4 = xla_tuple %s2, %s3
  %s5 = sld [smem:[#allocation0]]
  $region46: #{tpu_custom_call.1} parent=0
    _
  %s7 = ssub.s32 1, %s5
  %s8 = scalar_select 0, %s7, %s5
  $region1: #{tpu_custom_call.1} parent=0
    #allocation2 [shape = 'u8[8192]{0}', space=vmem, size = 0x2000, scoped, tag = 'input window, operand 0, single buffered']
    #allocation3 [shape = 's32[1]{0}', space=sflag, size = 0x4, scoped, tag = 'scoped memory for tpu_custom_call.1']
    #allocation4 [shape = 's32[1]{0}', space=sflag, size = 0x4, scoped, tag = 'scoped memory for tpu_custom_call.1']
    #allocation5 [shape = 'u8[8192]{0}', space=vmem, size = 0x2000, scoped, tag = 'input window, operand 1, single buffered']
    #allocation6 [shape = 's32[1]{0}', space=sflag, size = 0x4, scoped, tag = 'scoped memory for tpu_custom_call.1']
    #allocation7 [shape = 'u8[4096]{0}', space=vmem, size = 0x1000, scoped, tag = 'output window, operand 0, single buffered']
    #allocation8 [shape = 'u8[4096]{0}', space=vmem, size = 0x1000, scoped, tag = 'output window, operand 1, single buffered']
    #allocation9 [shape = 's32[1]{0}', space=sflag, size = 0x4, scoped, tag = 'scoped memory for tpu_custom_call.1']
    %9 = vsyncpa [#allocation3], 0
    %10 = vsyncpa [#allocation6], 0
    %11 = vsyncpa [#allocation4], 0
    %12 = vsyncpa [#allocation9], 0
    // Predicated region
    $region2: #{tpu_custom_call.1} parent=1 // pred_check
      _
    $region3: #{tpu_custom_call.1} parent=1 // pred_check_branch
      %14 = sbr.rel (0) target = $region5
    $region4: #{tpu_custom_call.1} parent=1 // pred_region
      %16 = vsyncadd [#allocation3], 0
      %s17 = sshll.u32 %s0, 4
      %s18 = int_to_ptr.hbm [resolvable:$true] %s17
      %s19 = sshll.u32 [#allocation2], 4
      %s20 = int_to_ptr.vmem [resolvable:$true] %s19
      %25 = dma.hbm_to_vmem [thread:$0]  %s18, 256, %s20, [#allocation3], 128, 128, 8
    $region5: #{tpu_custom_call.1} parent=1 // pred_fallthru
      _
    // Predicated region
    $region6: #{tpu_custom_call.1} parent=1 // pred_check
      _
    $region7: #{tpu_custom_call.1} parent=1 // pred_check_branch
      %27 = sbr.rel (0) target = $region9
    $region8: #{tpu_custom_call.1} parent=1 // pred_region
      %29 = vsyncadd [#allocation6], 0
      %s30 = sshll.u32 %s1, 4
      %s31 = int_to_ptr.hbm [resolvable:$true] %s30
      %s32 = sshll.u32 [#allocation5], 4
      %s33 = int_to_ptr.vmem [resolvable:$true] %s32
      %38 = dma.hbm_to_vmem [thread:$0]  %s31, 256, %s33, [#allocation6], 128, 128, 8
    $region9: #{tpu_custom_call.1} parent=1 // pred_fallthru
      _
    // Predicated region
    $region10: #{tpu_custom_call.1} parent=1 // pred_check
      _
    $region11: #{tpu_custom_call.1} parent=1 // pred_check_branch
      %40 = sbr.rel (0) target = $region13
    $region12: #{tpu_custom_call.1} parent=1 // pred_region
      %42 = dma.done [#allocation3], 256
    $region13: #{tpu_custom_call.1} parent=1 // pred_fallthru
      _
    // Predicated region
    $region14: #{tpu_custom_call.1} parent=1 // pred_check
      _
    $region15: #{tpu_custom_call.1} parent=1 // pred_check_branch
      %44 = sbr.rel (0) target = $region17
    $region16: #{tpu_custom_call.1} parent=1 // pred_region
      %46 = dma.done [#allocation6], 256
    $region17: #{tpu_custom_call.1} parent=1 // pred_fallthru
      _
    %p47 = scmp.eq.s32.totalorder 0, 0
    // Predicated region
    $region18: #{tpu_custom_call.1} parent=1 // pred_check
      %p48 = pneg %p47
    $region19: #{tpu_custom_call.1} parent=1 // pred_check_branch
      %50 = sbr.rel (%p48) target = $region21
    $region20: #{tpu_custom_call.1} parent=1 // pred_region
      %51 = vst [vmem:[#allocation7] sm:$0xff] 0.0
      %52 = vst [vmem:[#allocation8] sm:$0xff] 0.0
    $region21: #{tpu_custom_call.1} parent=1 // pred_fallthru
      _
    %s53 = smul.u32 0, 16
    %s54 = sadd.s32 %s53, 16
    %p55 = scmp.le.s32.totalorder %s54, 16
    // Predicated region
    $region22: #{tpu_custom_call.1} parent=1 // pred_check
      %p56 = pneg %p55
    $region23: #{tpu_custom_call.1} parent=1 // pred_check_branch
      %58 = sbr.rel (%p56) target = $region25
    $region24: #{tpu_custom_call.1} parent=1 // pred_region
      %v59 = vld [vmem:[#allocation2] sm:$0xff]
      %v60 = vld [vmem:[#allocation2 + $0x8] sm:$0xff]
      %v61 = vld [vmem:[#allocation5] sm:$0xff]
      %v62 = vld [vmem:[#allocation5 + $0x8] sm:$0xff]
      %v63 = vsub.f32 %v59, %v61
      %v64 = vsub.f32 %v60, %v62
      %v65 = vmul.f32 %v63, %v63
      %v66 = vmul.f32 %v64, %v64
      %v67 = vadd.f32 %v65, %v66
      %v68 = vand.u32 2147483647, %v63
      %v69 = vand.u32 2147483647, %v64
      %v70 = vadd.f32 %v68, %v69
      %v71 = vadd.f32 %v67, 0.0
      %v72 = vadd.f32 %v70, 0.0
      %v73 = vld [vmem:[#allocation7] sm:$0xff]
      %v74 = vadd.f32 %v73, %v71
      %75 = vst [vmem:[#allocation7] sm:$0xff] %v74
      %v76 = vld [vmem:[#allocation8] sm:$0xff]
      %v77 = vadd.f32 %v76, %v72
      %78 = vst [vmem:[#allocation8] sm:$0xff] %v77
    $region25: #{tpu_custom_call.1} parent=1 // pred_fallthru
      _
    %p79 = scmp.gt.s32.totalorder %s54, 16
    // Predicated region
    $region26: #{tpu_custom_call.1} parent=1 // pred_check
      %p80 = pneg %p79
    $region27: #{tpu_custom_call.1} parent=1 // pred_check_branch
      %82 = sbr.rel (%p80) target = $region29
    $region28: #{tpu_custom_call.1} parent=1 // pred_region
      %v83 = vld [vmem:[#allocation2] sm:$0xff]
      %v84 = vld [vmem:[#allocation2 + $0x8] sm:$0xff]
      %v85 = vld [vmem:[#allocation5] sm:$0xff]
      %v86 = vld [vmem:[#allocation5 + $0x8] sm:$0xff]
      %v87 = vsub.f32 %v83, %v85
      %v88 = vsub.f32 %v84, %v86
      %v89 = vlaneseq
      %v90 = vshrl.u32 %v89, 7
      %v91 = vadd.s32 %v90, 8
      %s92 = sadd.s32 %s53, 0
      %v93 = vstv %s92
      %v94 = vadd.s32 %v93, %v90
      %v95 = vadd.s32 %v93, %v91
      %vm96 = vcmp.lt.s32.totalorder %v94, 16
      %vm97 = vcmp.lt.s32.totalorder %v95, 16
      %v98 = vsel %vm96, %v87, 0.0
      %v99 = vsel %vm97, %v88, 0.0
      %v100 = vmul.f32 %v98, %v98
      %v101 = vmul.f32 %v99, %v99
      %v102 = vadd.f32 %v100, %v101
      %v103 = vand.u32 2147483647, %v98
      %v104 = vand.u32 2147483647, %v99
      %v105 = vadd.f32 %v103, %v104
      %v106 = vadd.f32 %v102, 0.0
      %v107 = vadd.f32 %v105, 0.0
      %v108 = vld [vmem:[#allocation7] sm:$0xff]
      %v109 = vadd.f32 %v108, %v106
      %110 = vst [vmem:[#allocation7] sm:$0xff] %v109
      %v111 = vld [vmem:[#allocation8] sm:$0xff]
      %v112 = vadd.f32 %v111, %v107
      %113 = vst [vmem:[#allocation8] sm:$0xff] %v112
    $region29: #{tpu_custom_call.1} parent=1 // pred_fallthru
      _
    // Predicated region
    $region30: #{tpu_custom_call.1} parent=1 // pred_check
      _
    $region31: #{tpu_custom_call.1} parent=1 // pred_check_branch
      %115 = sbr.rel (0) target = $region33
    $region32: #{tpu_custom_call.1} parent=1 // pred_region
      %117 = vsyncadd [#allocation4], 0
      %s119 = sshll.u32 [#allocation7], 4
      %s120 = int_to_ptr.vmem [resolvable:$true] %s119
      %s121 = sshll.u32 %s2, 4
      %s122 = int_to_ptr.hbm [resolvable:$true] %s121
      %124 = dma.vmem_to_hbm [thread:$0]  %s120, 128, %s122, [#allocation4]
    $region33: #{tpu_custom_call.1} parent=1 // pred_fallthru
      _
    // Predicated region
    $region34: #{tpu_custom_call.1} parent=1 // pred_check
      _
    $region35: #{tpu_custom_call.1} parent=1 // pred_check_branch
      %126 = sbr.rel (0) target = $region37
    $region36: #{tpu_custom_call.1} parent=1 // pred_region
      %128 = vsyncadd [#allocation9], 0
      %s130 = sshll.u32 [#allocation8], 4
      %s131 = int_to_ptr.vmem [resolvable:$true] %s130
      %s132 = sshll.u32 %s3, 4
      %s133 = int_to_ptr.hbm [resolvable:$true] %s132
      %135 = dma.vmem_to_hbm [thread:$0]  %s131, 128, %s133, [#allocation9]
    $region37: #{tpu_custom_call.1} parent=1 // pred_fallthru
      _
    // Predicated region
    $region38: #{tpu_custom_call.1} parent=1 // pred_check
      _
    $region39: #{tpu_custom_call.1} parent=1 // pred_check_branch
      %137 = sbr.rel (0) target = $region41
    $region40: #{tpu_custom_call.1} parent=1 // pred_region
      %139 = dma.done [#allocation4], 128
    $region41: #{tpu_custom_call.1} parent=1 // pred_fallthru
      _
    // Predicated region
    $region42: #{tpu_custom_call.1} parent=1 // pred_check
      _
    $region43: #{tpu_custom_call.1} parent=1 // pred_check_branch
      %141 = sbr.rel (0) target = $region45
    $region44: #{tpu_custom_call.1} parent=1 // pred_region
      %143 = dma.done [#allocation9], 128
    $region45: #{tpu_custom_call.1} parent=1 // pred_fallthru
      _
    %144 = vsyncpa [#allocation3], 1
    %145 = vsyncpa [#allocation6], 1
    %146 = vsyncpa [#allocation4], 1
    %147 = vsyncpa [#allocation9], 1

</llo_original>
